<compile_context>
chip_gen: v5e
topology: v5e:2x2
jax: 0.10.0
libtpu: 0.0.40
codegen_flags: <defaults>
</compile_context>

<pallas_src>
import math
import functools

import jax
import jax.numpy as jnp
from jax import lax
from jax.experimental import pallas as pl
from jax.experimental.pallas import tpu as pltpu


# ---------------------------------------------------------------------------
# Fused per-(batch, head) attention kernel.
# ---------------------------------------------------------------------------
def _mha_head_kernel(xq_ref, xk_ref, xv_ref,
                     wq_ref, wk_ref, wv_ref, wo_ref,
                     bq_ref, bk_ref, bv_ref, bo_ref,
                     rel_ref,
                     out_ref, attn_ref,
                     *, bf16_exp):
    f32 = jnp.float32
    bf16 = jnp.bfloat16
    h = pl.program_id(1)

    dn_mm = (((1,), (0,)), ((), ()))   # (M,K) x (K,N) -> (M,N)
    dn_nt = (((1,), (1,)), ((), ()))   # contract last dims of both: A @ B^T

    def project(x_ref, w_ref, b_ref):
        # bf16 MXU operands, f32 accumulation; bias add in f32.
        return lax.dot_general(x_ref[...], w_ref[...], dn_mm,
                               preferred_element_type=f32) + b_ref[...]

    q_h = project(xq_ref, wq_ref, bq_ref)        # (S, d_k) f32
    k_h = project(xk_ref, wk_ref, bk_ref)        # (S, d_k) f32, already / sqrt(d_k)
    v_h = project(xv_ref, wv_ref, bv_ref)        # (S, d_k) f32

    # Fused score matmul:
    #   Q @ (K/sqrt(d_k) + rel)^T == Q K^T / sqrt(d_k) + Q rel^T
    k_rel = (k_h + rel_ref[...]).astype(bf16)
    scores = lax.dot_general(q_h.astype(bf16), k_rel, dn_nt,
                             preferred_element_type=f32)       # (S, S) f32

    # Numerically stable softmax.  exp in bf16 where the chip has a bf16 EUP
    # (v6e / v7x); row-sum, reciprocal and downstream math stay in f32.
    m = jnp.max(scores, axis=-1, keepdims=True)
    z = scores - m
    e = jnp.exp(z.astype(bf16)).astype(f32) if bf16_exp else jnp.exp(z)
    denom = jnp.sum(e, axis=-1, keepdims=True)
    # approx reciprocal (~2^-12 rel error) — fine here since attn is emitted in
    # bf16 anyway; switch to an exact divide if exact row-sums are required.
    attn = e * pl.reciprocal(denom, approx=True)

    # TODO(synk): dropout on attention weights / output omitted (eval mode).
    attn_ref[...] = attn.astype(attn_ref.dtype)                # lane-dense (S,S) store

    ctx = lax.dot_general(attn.astype(bf16), v_h.astype(bf16), dn_mm,
                          preferred_element_type=f32)          # (S, d_k)
    contrib = lax.dot_general(ctx.astype(bf16), wo_ref[...], dn_mm,
                              preferred_element_type=f32)      # (S, d_model)

    # Output projection accumulated per head into the resident f32 output block.
    @pl.when(h == 0)
    def _():
        out_ref[...] = jnp.zeros_like(out_ref)

    out_ref[...] += contrib

    @pl.when(h == pl.num_programs(1) - 1)
    def _():
        out_ref[...] += bo_ref[...]


# ---------------------------------------------------------------------------
# Wrapper
# ---------------------------------------------------------------------------
def _use_bf16_exp():
    # bf16 EUP/VPU exist on v6e / v7x but not on v5e or earlier.
    try:
        kind = jax.devices()[0].device_kind.lower()
    except Exception:
        return False
    return any(t in kind for t in ("v6", "v7", "7x"))


def _vmem_limit_bytes(S, d_model, d_k, attn_itemsize):
    f32, bf16 = 4, 2
    blocks = (3 * S * d_model * bf16            # xq / xk / xv activation blocks
              + 3 * d_model * d_k * bf16        # per-head W_q / W_k / W_v tiles
              + d_k * d_model * bf16            # per-head W_o row tile
              + 3 * d_k * f32 + d_model * f32   # biases
              + S * d_k * f32                   # relative-position table
              + S * d_model * f32               # resident output accumulator block
              + S * S * attn_itemsize)          # per-head attention output block
    temps = 2 * S * S * f32 + 5 * S * d_k * f32  # scores/e + q/k/v/ctx temporaries
    limit = 2 * blocks + temps + (4 << 20)       # 2x: double-buffered pipeline
    return int(min(max(limit, 16 << 20), 56 << 20))  # <=56 MiB: v7x headroom


def multi_head_attention(params, query, key_, value, num_heads,
                         max_relative_position, attn_dtype=jnp.bfloat16):
    B, S, d_model = query.shape
    H = num_heads
    assert d_model % H == 0
    d_k = d_model // H
    inv_sqrt_dk = 1.0 / math.sqrt(d_k)

    rel = relative_encoding(params["rel_table"], S, max_relative_position)  # (S, d_k)

    def split_w(w):   # (d_model, d_model) -> (H, d_model, d_k) per-head columns
        return w.reshape(d_model, H, d_k).transpose(1, 0, 2)

    def split_b(b):   # (d_model,) -> (H, 1, d_k)
        return b.reshape(H, 1, d_k)

    # bf16 MXU weight operands; 1/sqrt(d_k) folded into the K projection
    # (wrapper-side, one-time — folding into Q would wrongly scale Q·rel^T).
    wq = split_w(params["W_q"]).astype(jnp.bfloat16)
    wk = split_w(params["W_k"] * inv_sqrt_dk).astype(jnp.bfloat16)
    wv = split_w(params["W_v"]).astype(jnp.bfloat16)
    wo = params["W_o"].reshape(H, d_k, d_model).astype(jnp.bfloat16)
    bq = split_b(params["b_q"]).astype(jnp.float32)
    bk = split_b(params["b_k"] * inv_sqrt_dk).astype(jnp.float32)
    bv = split_b(params["b_v"]).astype(jnp.float32)
    bo = params["b_o"][None, :].astype(jnp.float32)

    # bf16 activations halve input DMA / VMEM; the kernel accumulates in f32.
    # TODO(synk): for self-attention (query is key is value) the three inputs
    # could be deduplicated to a single operand to cut the input traffic 3x.
    xq = query.astype(jnp.bfloat16)
    xk = key_.astype(jnp.bfloat16)
    xv = value.astype(jnp.bfloat16)

    kern = functools.partial(_mha_head_kernel, bf16_exp=_use_bf16_exp())

    x_spec = pl.BlockSpec((None, S, d_model), lambda b, h: (b, 0, 0))
    w_in_spec = pl.BlockSpec((None, d_model, d_k), lambda b, h: (h, 0, 0))
    w_out_spec = pl.BlockSpec((None, d_k, d_model), lambda b, h: (h, 0, 0))
    b_in_spec = pl.BlockSpec((None, 1, d_k), lambda b, h: (h, 0, 0))
    b_out_spec = pl.BlockSpec((1, d_model), lambda b, h: (0, 0))
    rel_spec = pl.BlockSpec((S, d_k), lambda b, h: (0, 0))

    out, attn = pl.pallas_call(
        kern,
        out_shape=(jax.ShapeDtypeStruct((B, S, d_model), jnp.float32),
                   jax.ShapeDtypeStruct((B, H, S, S), attn_dtype)),
        grid=(B, H),
        in_specs=[x_spec, x_spec, x_spec,
                  w_in_spec, w_in_spec, w_in_spec, w_out_spec,
                  b_in_spec, b_in_spec, b_in_spec, b_out_spec,
                  rel_spec],
        out_specs=(pl.BlockSpec((None, S, d_model), lambda b, h: (b, 0, 0)),
                   pl.BlockSpec((None, None, S, S), lambda b, h: (b, h, 0, 0))),
        compiler_params=pltpu.CompilerParams(
            dimension_semantics=("parallel", "arbitrary"),
            vmem_limit_bytes=_vmem_limit_bytes(
                S, d_model, d_k, jnp.dtype(attn_dtype).itemsize)),
    )(xq, xk, xv, wq, wk, wv, wo, bq, bk, bv, bo, rel)
    return out, attn


# ---------------------------------------------------------------------------
# Parameter init + relative positional encoding (glue, plain JAX)
# ---------------------------------------------------------------------------
def init_params(key, d_model, num_heads, max_relative_position):
    d_k = d_model // num_heads
    ks = jax.random.split(key, 9)
    s = 1.0 / math.sqrt(d_model)
    # W_* stored already transposed so the kernel computes x @ W + b
    return {
        "W_q": jax.random.normal(ks[0], (d_model, d_model), jnp.float32) * s,
        "b_q": jax.random.normal(ks[1], (d_model,), jnp.float32) * s,
        "W_k": jax.random.normal(ks[2], (d_model, d_model), jnp.float32) * s,
        "b_k": jax.random.normal(ks[3], (d_model,), jnp.float32) * s,
        "W_v": jax.random.normal(ks[4], (d_model, d_model), jnp.float32) * s,
        "b_v": jax.random.normal(ks[5], (d_model,), jnp.float32) * s,
        "W_o": jax.random.normal(ks[6], (d_model, d_model), jnp.float32) * s,
        "b_o": jax.random.normal(ks[7], (d_model,), jnp.float32) * s,
        "rel_table": jax.random.normal(
            ks[8], (2 * max_relative_position + 1, d_k), jnp.float32) * s,
    }


def relative_encoding(rel_table, seq_length, max_relative_position):
    # TODO(synk): the RelativePositionalEncoding class body was not provided;
    # synthesized as a clipped-position embedding lookup returning (S, d_k),
    # consistent with matmul(Q, rel^T) in ScaledDotProductAttention.
    idx = jnp.clip(jnp.arange(seq_length) + max_relative_position,
                   0, 2 * max_relative_position)
    return rel_table[idx]


# ---------------------------------------------------------------------------
# Pure-JAX f32 reference for verification
# ---------------------------------------------------------------------------
def reference(params, query, key_, value, num_heads, max_relative_position):
    B, S, d_model = query.shape
    d_k = d_model // num_heads

    def proj(x, w, b):
        return (x @ w + b).reshape(B, S, num_heads, d_k).transpose(0, 2, 1, 3)

    Q = proj(query, params["W_q"], params["b_q"])
    K = proj(key_, params["W_k"], params["b_k"])
    V = proj(value, params["W_v"], params["b_v"])
    rel = relative_encoding(params["rel_table"], S, max_relative_position)

    scores = jnp.einsum("bhqd,bhkd->bhqk", Q, K) / math.sqrt(d_k)
    scores = scores + jnp.einsum("bhqd,kd->bhqk", Q, rel)
    attn = jax.nn.softmax(scores, axis=-1)
    out = jnp.einsum("bhqk,bhkd->bhqd", attn, V)
    out = out.transpose(0, 2, 1, 3).reshape(B, S, d_model)
    out = out @ params["W_o"] + params["b_o"]
    return out, attn


if __name__ == "__main__":
    B, S, d_model, num_heads = 2, 8, 32, 4
    max_relative_position = 32

    key = jax.random.PRNGKey(0)
    kp, kq, kk, kv = jax.random.split(key, 4)
    params = init_params(kp, d_model, num_heads, max_relative_position)

    query = jax.random.normal(kq, (B, S, d_model), jnp.float32)
    key_in = jax.random.normal(kk, (B, S, d_model), jnp.float32)
    value = jax.random.normal(kv, (B, S, d_model), jnp.float32)

    out, attn = multi_head_attention(params, query, key_in, value,
                                     num_heads, max_relative_position)
    out = jax.block_until_ready(out)
    attn = jax.block_until_ready(attn)

    ref_out, ref_attn = reference(params, query, key_in, value,
                                  num_heads, max_relative_position)

    assert out.shape == (B, S, d_model)
    assert attn.shape == (B, num_heads, S, S)
    # bf16 MXU operands / bf16 attn output / approx reciprocal -> relaxed
    # tolerances (all accumulation and softmax normalization are in f32).
    assert jnp.allclose(out, ref_out, atol=5e-2, rtol=5e-2)
    assert jnp.allclose(attn.astype(jnp.float32), ref_attn, atol=5e-2, rtol=5e-2)

    print("KERNEL_OK")
</pallas_src>

<mosaic_0001>
module attributes {stable_mosaic.version = 11 : i64} {
  func.func @_mha_head_kernel(%arg0: i32, %arg1: i32, %arg2: memref<1x8x32xbf16, #tpu.memory_space<vmem>>, %arg3: memref<1x8x32xbf16, #tpu.memory_space<vmem>>, %arg4: memref<1x8x32xbf16, #tpu.memory_space<vmem>>, %arg5: memref<1x32x8xbf16, #tpu.memory_space<vmem>>, %arg6: memref<1x32x8xbf16, #tpu.memory_space<vmem>>, %arg7: memref<1x32x8xbf16, #tpu.memory_space<vmem>>, %arg8: memref<1x8x32xbf16, #tpu.memory_space<vmem>>, %arg9: memref<1x1x8xf32, #tpu.memory_space<vmem>>, %arg10: memref<1x1x8xf32, #tpu.memory_space<vmem>>, %arg11: memref<1x1x8xf32, #tpu.memory_space<vmem>>, %arg12: memref<1x32xf32, #tpu.memory_space<vmem>>, %arg13: memref<8x8xf32, #tpu.memory_space<vmem>>, %arg14: memref<1x8x32xf32, #tpu.memory_space<vmem>>, %arg15: memref<1x1x8x8xbf16, #tpu.memory_space<vmem>>) attributes {dimension_semantics = [#tpu.dimension_semantics<parallel>, #tpu.dimension_semantics<arbitrary>], iteration_bounds = array<i64: 2, 4>, scalar_prefetch = 0 : i64, scratch_operands = 0 : i64, tpu.core_type = #tpu.core_type<tc>, window_params = [{transform_indices = @transform_0, window_bounds = array<i64: 1, 8, 32>}, {transform_indices = @transform_1, window_bounds = array<i64: 1, 8, 32>}, {transform_indices = @transform_2, window_bounds = array<i64: 1, 8, 32>}, {transform_indices = @transform_3, window_bounds = array<i64: 1, 32, 8>}, {transform_indices = @transform_4, window_bounds = array<i64: 1, 32, 8>}, {transform_indices = @transform_5, window_bounds = array<i64: 1, 32, 8>}, {transform_indices = @transform_6, window_bounds = array<i64: 1, 8, 32>}, {transform_indices = @transform_7, window_bounds = array<i64: 1, 1, 8>}, {transform_indices = @transform_8, window_bounds = array<i64: 1, 1, 8>}, {transform_indices = @transform_9, window_bounds = array<i64: 1, 1, 8>}, {pipeline_mode = #tpu.pipeline_mode<synchronous>, transform_indices = @transform_10, window_bounds = array<i64: 1, 32>}, {pipeline_mode = #tpu.pipeline_mode<synchronous>, transform_indices = @transform_11, window_bounds = array<i64: 8, 8>}, {transform_indices = @transform_12, window_bounds = array<i64: 1, 8, 32>}, {transform_indices = @transform_13, window_bounds = array<i64: 1, 1, 8, 8>}]} {
    %c0 = arith.constant 0 : index
    %c0_0 = arith.constant 0 : index
    %c0_1 = arith.constant 0 : index
    %0 = vector.load %arg2[%c0, %c0_0, %c0_1] : memref<1x8x32xbf16, #tpu.memory_space<vmem>>, vector<1x8x32xbf16>
    %1 = vector.shape_cast %0 : vector<1x8x32xbf16> to vector<8x32xbf16>
    %c0_2 = arith.constant 0 : index
    %c0_3 = arith.constant 0 : index
    %c0_4 = arith.constant 0 : index
    %2 = vector.load %arg5[%c0_2, %c0_3, %c0_4] : memref<1x32x8xbf16, #tpu.memory_space<vmem>>, vector<1x32x8xbf16>
    %3 = vector.shape_cast %2 : vector<1x32x8xbf16> to vector<32x8xbf16>
    %cst = arith.constant dense<0.000000e+00> : vector<8x8xf32>
    %4 = tpu.matmul %1, %3, %cst {dimension_numbers = #tpu.dot_dimension_numbers<[1], [0], [0], [1], [0, 0, 1, 1], [], []>} : vector<8x32xbf16>, vector<32x8xbf16>, vector<8x8xf32> -> vector<8x8xf32>
    %c0_5 = arith.constant 0 : index
    %c0_6 = arith.constant 0 : index
    %c0_7 = arith.constant 0 : index
    %5 = vector.load %arg9[%c0_5, %c0_6, %c0_7] : memref<1x1x8xf32, #tpu.memory_space<vmem>>, vector<1x1x8xf32>
    %6 = vector.shape_cast %5 : vector<1x1x8xf32> to vector<1x8xf32>
    %7 = vector.broadcast %6 : vector<1x8xf32> to vector<8x8xf32>
    %8 = arith.addf %4, %7 : vector<8x8xf32>
    %c0_8 = arith.constant 0 : index
    %c0_9 = arith.constant 0 : index
    %c0_10 = arith.constant 0 : index
    %9 = vector.load %arg3[%c0_8, %c0_9, %c0_10] : memref<1x8x32xbf16, #tpu.memory_space<vmem>>, vector<1x8x32xbf16>
    %10 = vector.shape_cast %9 : vector<1x8x32xbf16> to vector<8x32xbf16>
    %c0_11 = arith.constant 0 : index
    %c0_12 = arith.constant 0 : index
    %c0_13 = arith.constant 0 : index
    %11 = vector.load %arg6[%c0_11, %c0_12, %c0_13] : memref<1x32x8xbf16, #tpu.memory_space<vmem>>, vector<1x32x8xbf16>
    %12 = vector.shape_cast %11 : vector<1x32x8xbf16> to vector<32x8xbf16>
    %cst_14 = arith.constant dense<0.000000e+00> : vector<8x8xf32>
    %13 = tpu.matmul %10, %12, %cst_14 {dimension_numbers = #tpu.dot_dimension_numbers<[1], [0], [0], [1], [0, 0, 1, 1], [], []>} : vector<8x32xbf16>, vector<32x8xbf16>, vector<8x8xf32> -> vector<8x8xf32>
    %c0_15 = arith.constant 0 : index
    %c0_16 = arith.constant 0 : index
    %c0_17 = arith.constant 0 : index
    %14 = vector.load %arg10[%c0_15, %c0_16, %c0_17] : memref<1x1x8xf32, #tpu.memory_space<vmem>>, vector<1x1x8xf32>
    %15 = vector.shape_cast %14 : vector<1x1x8xf32> to vector<1x8xf32>
    %16 = vector.broadcast %15 : vector<1x8xf32> to vector<8x8xf32>
    %17 = arith.addf %13, %16 : vector<8x8xf32>
    %c0_18 = arith.constant 0 : index
    %c0_19 = arith.constant 0 : index
    %c0_20 = arith.constant 0 : index
    %18 = vector.load %arg4[%c0_18, %c0_19, %c0_20] : memref<1x8x32xbf16, #tpu.memory_space<vmem>>, vector<1x8x32xbf16>
    %19 = vector.shape_cast %18 : vector<1x8x32xbf16> to vector<8x32xbf16>
    %c0_21 = arith.constant 0 : index
    %c0_22 = arith.constant 0 : index
    %c0_23 = arith.constant 0 : index
    %20 = vector.load %arg7[%c0_21, %c0_22, %c0_23] : memref<1x32x8xbf16, #tpu.memory_space<vmem>>, vector<1x32x8xbf16>
    %21 = vector.shape_cast %20 : vector<1x32x8xbf16> to vector<32x8xbf16>
    %cst_24 = arith.constant dense<0.000000e+00> : vector<8x8xf32>
    %22 = tpu.matmul %19, %21, %cst_24 {dimension_numbers = #tpu.dot_dimension_numbers<[1], [0], [0], [1], [0, 0, 1, 1], [], []>} : vector<8x32xbf16>, vector<32x8xbf16>, vector<8x8xf32> -> vector<8x8xf32>
    %c0_25 = arith.constant 0 : index
    %c0_26 = arith.constant 0 : index
    %c0_27 = arith.constant 0 : index
    %23 = vector.load %arg11[%c0_25, %c0_26, %c0_27] : memref<1x1x8xf32, #tpu.memory_space<vmem>>, vector<1x1x8xf32>
    %24 = vector.shape_cast %23 : vector<1x1x8xf32> to vector<1x8xf32>
    %25 = vector.broadcast %24 : vector<1x8xf32> to vector<8x8xf32>
    %26 = arith.addf %22, %25 : vector<8x8xf32>
    %c0_28 = arith.constant 0 : index
    %c0_29 = arith.constant 0 : index
    %27 = vector.load %arg13[%c0_28, %c0_29] : memref<8x8xf32, #tpu.memory_space<vmem>>, vector<8x8xf32>
    %28 = arith.addf %17, %27 : vector<8x8xf32>
    %29 = arith.truncf %28 : vector<8x8xf32> to vector<8x8xbf16>
    %30 = arith.truncf %8 : vector<8x8xf32> to vector<8x8xbf16>
    %cst_30 = arith.constant dense<0.000000e+00> : vector<8x8xf32>
    %31 = tpu.matmul %30, %29, %cst_30 {dimension_numbers = #tpu.dot_dimension_numbers<[1], [1], [0], [0], [0, 0, 1, 0], [], []>} : vector<8x8xbf16>, vector<8x8xbf16>, vector<8x8xf32> -> vector<8x8xf32>
    %cst_31 = arith.constant dense<0xFF800000> : vector<8xf32>
    %32 = vector.multi_reduction <maximumf>, %31, %cst_31 [1] : vector<8x8xf32> to vector<8xf32>
    %33 = vector.shape_cast %32 : vector<8xf32> to vector<8x1xf32>
    %34 = vector.broadcast %33 : vector<8x1xf32> to vector<8x8xf32>
    %35 = arith.subf %31, %34 : vector<8x8xf32>
    %36 = math.exp %35 : vector<8x8xf32>
    %cst_32 = arith.constant dense<0.000000e+00> : vector<8xf32>
    %37 = vector.multi_reduction <add>, %36, %cst_32 [1] : vector<8x8xf32> to vector<8xf32>
    %38 = vector.shape_cast %37 : vector<8xf32> to vector<8x1xf32>
    %39 = tpu.reciprocal %38 {approx = true} : vector<8x1xf32> -> vector<8x1xf32>
    %40 = vector.broadcast %39 : vector<8x1xf32> to vector<8x8xf32>
    %41 = arith.mulf %36, %40 : vector<8x8xf32>
    %42 = arith.truncf %41 : vector<8x8xf32> to vector<8x8xbf16>
    %c0_33 = arith.constant 0 : index
    %c0_34 = arith.constant 0 : index
    %c0_35 = arith.constant 0 : index
    %c0_36 = arith.constant 0 : index
    %43 = vector.load %arg15[%c0_33, %c0_34, %c0_35, %c0_36] : memref<1x1x8x8xbf16, #tpu.memory_space<vmem>>, vector<1x1x8x8xbf16>
    %44 = vector.shape_cast %43 : vector<1x1x8x8xbf16> to vector<8x8xbf16>
    %45 = vector.shape_cast %42 : vector<8x8xbf16> to vector<1x1x8x8xbf16>
    tpu.vector_store %arg15[%c0_33, %c0_34, %c0_35, %c0_36], %45 {strides = array<i32>} : memref<1x1x8x8xbf16, #tpu.memory_space<vmem>>, vector<1x1x8x8xbf16>,
    %46 = arith.truncf %41 : vector<8x8xf32> to vector<8x8xbf16>
    %47 = arith.truncf %26 : vector<8x8xf32> to vector<8x8xbf16>
    %cst_37 = arith.constant dense<0.000000e+00> : vector<8x8xf32>
    %48 = tpu.matmul %46, %47, %cst_37 {dimension_numbers = #tpu.dot_dimension_numbers<[1], [0], [0], [1], [0, 0, 1, 1], [], []>} : vector<8x8xbf16>, vector<8x8xbf16>, vector<8x8xf32> -> vector<8x8xf32>
    %49 = arith.truncf %48 : vector<8x8xf32> to vector<8x8xbf16>
    %c0_38 = arith.constant 0 : index
    %c0_39 = arith.constant 0 : index
    %c0_40 = arith.constant 0 : index
    %50 = vector.load %arg8[%c0_38, %c0_39, %c0_40] : memref<1x8x32xbf16, #tpu.memory_space<vmem>>, vector<1x8x32xbf16>
    %51 = vector.shape_cast %50 : vector<1x8x32xbf16> to vector<8x32xbf16>
    %cst_41 = arith.constant dense<0.000000e+00> : vector<8x32xf32>
    %52 = tpu.matmul %49, %51, %cst_41 {dimension_numbers = #tpu.dot_dimension_numbers<[1], [0], [0], [1], [0, 0, 1, 1], [], []>} : vector<8x8xbf16>, vector<8x32xbf16>, vector<8x32xf32> -> vector<8x32xf32>
    %c0_i32 = arith.constant 0 : i32
    %53 = arith.cmpi eq, %arg1, %c0_i32 : i32
    %54 = arith.extui %53 : i1 to i32
    %c0_i32_42 = arith.constant 0 : i32
    %55 = arith.cmpi ne, %54, %c0_i32_42 : i32
    scf.if %55 {
      %cst_50 = arith.constant 0.000000e+00 : f32
      %65 = vector.broadcast %cst_50 : f32 to vector<8x32xf32>
      %c0_51 = arith.constant 0 : index
      %c0_52 = arith.constant 0 : index
      %c0_53 = arith.constant 0 : index
      %66 = vector.load %arg14[%c0_51, %c0_52, %c0_53] : memref<1x8x32xf32, #tpu.memory_space<vmem>>, vector<1x8x32xf32>
      %67 = vector.shape_cast %66 : vector<1x8x32xf32> to vector<8x32xf32>
      %68 = vector.shape_cast %65 : vector<8x32xf32> to vector<1x8x32xf32>
      tpu.vector_store %arg14[%c0_51, %c0_52, %c0_53], %68 {strides = array<i32>} : memref<1x8x32xf32, #tpu.memory_space<vmem>>, vector<1x8x32xf32>,
    } else {
    }
    %c0_43 = arith.constant 0 : index
    %c0_44 = arith.constant 0 : index
    %c0_45 = arith.constant 0 : index
    %56 = vector.load %arg14[%c0_43, %c0_44, %c0_45] : memref<1x8x32xf32, #tpu.memory_space<vmem>>, vector<1x8x32xf32>
    %57 = vector.shape_cast %56 : vector<1x8x32xf32> to vector<8x32xf32>
    %58 = arith.addf %57, %52 : vector<8x32xf32>
    %c0_46 = arith.constant 0 : index
    %c0_47 = arith.constant 0 : index
    %c0_48 = arith.constant 0 : index
    %59 = vector.load %arg14[%c0_46, %c0_47, %c0_48] : memref<1x8x32xf32, #tpu.memory_space<vmem>>, vector<1x8x32xf32>
    %60 = vector.shape_cast %59 : vector<1x8x32xf32> to vector<8x32xf32>
    %61 = vector.shape_cast %58 : vector<8x32xf32> to vector<1x8x32xf32>
    tpu.vector_store %arg14[%c0_46, %c0_47, %c0_48], %61 {strides = array<i32>} : memref<1x8x32xf32, #tpu.memory_space<vmem>>, vector<1x8x32xf32>,
    %c3_i32 = arith.constant 3 : i32
    %62 = arith.cmpi eq, %arg1, %c3_i32 : i32
    %63 = arith.extui %62 : i1 to i32
    %c0_i32_49 = arith.constant 0 : i32
    %64 = arith.cmpi ne, %63, %c0_i32_49 : i32
    scf.if %64 {
      %c0_50 = arith.constant 0 : index
      %c0_51 = arith.constant 0 : index
      %c0_52 = arith.constant 0 : index
      %65 = vector.load %arg14[%c0_50, %c0_51, %c0_52] : memref<1x8x32xf32, #tpu.memory_space<vmem>>, vector<1x8x32xf32>
      %66 = vector.shape_cast %65 : vector<1x8x32xf32> to vector<8x32xf32>
      %c0_53 = arith.constant 0 : index
      %c0_54 = arith.constant 0 : index
      %67 = vector.load %arg12[%c0_53, %c0_54] : memref<1x32xf32, #tpu.memory_space<vmem>>, vector<1x32xf32>
      %68 = vector.broadcast %67 : vector<1x32xf32> to vector<8x32xf32>
      %69 = arith.addf %66, %68 : vector<8x32xf32>
      %c0_55 = arith.constant 0 : index
      %c0_56 = arith.constant 0 : index
      %c0_57 = arith.constant 0 : index
      %70 = vector.load %arg14[%c0_55, %c0_56, %c0_57] : memref<1x8x32xf32, #tpu.memory_space<vmem>>, vector<1x8x32xf32>
      %71 = vector.shape_cast %70 : vector<1x8x32xf32> to vector<8x32xf32>
      %72 = vector.shape_cast %69 : vector<8x32xf32> to vector<1x8x32xf32>
      tpu.vector_store %arg14[%c0_55, %c0_56, %c0_57], %72 {strides = array<i32>} : memref<1x8x32xf32, #tpu.memory_space<vmem>>, vector<1x8x32xf32>,
    } else {
    }
    return
  }
  func.func @transform_0(%arg0: i32, %arg1: i32) -> (i32, i32, i32) {
    %c0_i32 = arith.constant 0 : i32
    %c0_i32_0 = arith.constant 0 : i32
    %c0_i32_1 = arith.constant 0 : i32
    return %arg0, %c0_i32, %c0_i32_0 : i32, i32, i32
  }
  func.func @transform_1(%arg0: i32, %arg1: i32) -> (i32, i32, i32) {
    %c0_i32 = arith.constant 0 : i32
    %c0_i32_0 = arith.constant 0 : i32
    %c0_i32_1 = arith.constant 0 : i32
    return %arg0, %c0_i32, %c0_i32_0 : i32, i32, i32
  }
  func.func @transform_2(%arg0: i32, %arg1: i32) -> (i32, i32, i32) {
    %c0_i32 = arith.constant 0 : i32
    %c0_i32_0 = arith.constant 0 : i32
    %c0_i32_1 = arith.constant 0 : i32
    return %arg0, %c0_i32, %c0_i32_0 : i32, i32, i32
  }
  func.func @transform_3(%arg0: i32, %arg1: i32) -> (i32, i32, i32) {
    %c0_i32 = arith.constant 0 : i32
    %c0_i32_0 = arith.constant 0 : i32
    %c0_i32_1 = arith.constant 0 : i32
    return %arg1, %c0_i32, %c0_i32_0 : i32, i32, i32
  }
  func.func @transform_4(%arg0: i32, %arg1: i32) -> (i32, i32, i32) {
    %c0_i32 = arith.constant 0 : i32
    %c0_i32_0 = arith.constant 0 : i32
    %c0_i32_1 = arith.constant 0 : i32
    return %arg1, %c0_i32, %c0_i32_0 : i32, i32, i32
  }
  func.func @transform_5(%arg0: i32, %arg1: i32) -> (i32, i32, i32) {
    %c0_i32 = arith.constant 0 : i32
    %c0_i32_0 = arith.constant 0 : i32
    %c0_i32_1 = arith.constant 0 : i32
    return %arg1, %c0_i32, %c0_i32_0 : i32, i32, i32
  }
  func.func @transform_6(%arg0: i32, %arg1: i32) -> (i32, i32, i32) {
    %c0_i32 = arith.constant 0 : i32
    %c0_i32_0 = arith.constant 0 : i32
    %c0_i32_1 = arith.constant 0 : i32
    return %arg1, %c0_i32, %c0_i32_0 : i32, i32, i32
  }
  func.func @transform_7(%arg0: i32, %arg1: i32) -> (i32, i32, i32) {
    %c0_i32 = arith.constant 0 : i32
    %c0_i32_0 = arith.constant 0 : i32
    %c0_i32_1 = arith.constant 0 : i32
    return %arg1, %c0_i32, %c0_i32_0 : i32, i32, i32
  }
  func.func @transform_8(%arg0: i32, %arg1: i32) -> (i32, i32, i32) {
    %c0_i32 = arith.constant 0 : i32
    %c0_i32_0 = arith.constant 0 : i32
    %c0_i32_1 = arith.constant 0 : i32
    return %arg1, %c0_i32, %c0_i32_0 : i32, i32, i32
  }
  func.func @transform_9(%arg0: i32, %arg1: i32) -> (i32, i32, i32) {
    %c0_i32 = arith.constant 0 : i32
    %c0_i32_0 = arith.constant 0 : i32
    %c0_i32_1 = arith.constant 0 : i32
    return %arg1, %c0_i32, %c0_i32_0 : i32, i32, i32
  }
  func.func @transform_10(%arg0: i32, %arg1: i32) -> (i32, i32) {
    %c0_i32 = arith.constant 0 : i32
    %c0_i32_0 = arith.constant 0 : i32
    %c0_i32_1 = arith.constant 0 : i32
    return %c0_i32, %c0_i32_0 : i32, i32
  }
  func.func @transform_11(%arg0: i32, %arg1: i32) -> (i32, i32) {
    %c0_i32 = arith.constant 0 : i32
    %c0_i32_0 = arith.constant 0 : i32
    %c0_i32_1 = arith.constant 0 : i32
    return %c0_i32, %c0_i32_0 : i32, i32
  }
  func.func @transform_12(%arg0: i32, %arg1: i32) -> (i32, i32, i32) {
    %c0_i32 = arith.constant 0 : i32
    %c0_i32_0 = arith.constant 0 : i32
    %c0_i32_1 = arith.constant 0 : i32
    return %arg0, %c0_i32, %c0_i32_0 : i32, i32, i32
  }
  func.func @transform_13(%arg0: i32, %arg1: i32) -> (i32, i32, i32, i32) {
    %c0_i32 = arith.constant 0 : i32
    %c0_i32_0 = arith.constant 0 : i32
    %c0_i32_1 = arith.constant 0 : i32
    return %arg0, %arg1, %c0_i32, %c0_i32_0 : i32, i32, i32, i32
  }
}

</mosaic_0001>

<llo_original>
// kernel: tpu_custom_call.1
$region0: #{tpu_custom_call.1}
  #allocation0 [shape = 'u32[]', space=smem, size = 0x4, offset = 0x4, fixed_abs, tag = 'smem constant byte address 0x4 - core index']
  #allocation1 [shape = 'u32[72,128]{1,0:T(1,128)}', space=vmem, size = 0x9000, scoped, tag = 'internal scratch']
  %s0 = inlined_call_operand.vmem [shape: bf16[2,8,32], index: 0, kind: input, shape index: {}]
  %s1 = inlined_call_operand.vmem [shape: bf16[2,8,32], index: 1, kind: input, shape index: {}]
  %s2 = inlined_call_operand.vmem [shape: bf16[2,8,32], index: 2, kind: input, shape index: {}]
  %s3 = inlined_call_operand.vmem [shape: bf16[4,32,8], index: 3, kind: input, shape index: {}]
  %s4 = inlined_call_operand.vmem [shape: bf16[4,32,8], index: 4, kind: input, shape index: {}]
  %s5 = inlined_call_operand.vmem [shape: bf16[4,32,8], index: 5, kind: input, shape index: {}]
  %s6 = inlined_call_operand.vmem [shape: bf16[4,8,32], index: 6, kind: input, shape index: {}]
  %s7 = inlined_call_operand.vmem [shape: f32[4,1,8], index: 7, kind: input, shape index: {}]
  %s8 = inlined_call_operand.vmem [shape: f32[4,1,8], index: 8, kind: input, shape index: {}]
  %s9 = inlined_call_operand.vmem [shape: f32[4,1,8], index: 9, kind: input, shape index: {}]
  %s10 = inlined_call_operand.vmem [shape: f32[1,32], index: 10, kind: input, shape index: {}]
  %s11 = inlined_call_operand.vmem [shape: f32[8,8], index: 11, kind: input, shape index: {}]
  %s12 = inlined_call_operand.hbm [shape: f32[2,8,32], index: 12, kind: output, shape index: {0}]
  %s13 = inlined_call_operand.hbm [shape: bf16[2,4,8,8], index: 13, kind: output, shape index: {1}]
  %14 = xla_tuple %s12, %s13
  %s15 = sld [smem:[#allocation0]]
  $region97: #{tpu_custom_call.1} parent=0
    _
  %s17 = ssub.s32 1, %s15
  %s18 = scalar_select 0, %s17, %s15
  $region1: #{tpu_custom_call.1} parent=0
    #allocation2 [shape = 'u8[8192]{0}', space=vmem, size = 0x2000, scoped, tag = 'output window, operand 0']
    #allocation3 [shape = 's32[2]{0}', space=sflag, size = 0x8, scoped, tag = 'scoped memory for tpu_custom_call.1']
    #allocation4 [shape = 'u8[4096]{0}', space=vmem, size = 0x1000, scoped, tag = 'output window, operand 1']
    #allocation5 [shape = 's32[2]{0}', space=sflag, size = 0x8, scoped, tag = 'scoped memory for tpu_custom_call.1']
    %19 = vsyncpa [#allocation3], 0
    %s20 = scalar_lea.sflag [#allocation3], 1
    %21 = vsyncpa %s20, 0
    %22 = vsyncpa [#allocation5], 0
    %s23 = scalar_lea.sflag [#allocation5], 1
    %24 = vsyncpa %s23, 0
    loop: start=0, step=1, limit=10
    $region2: #{tpu_custom_call.1} parent=1 // loop_pre_header
      _
    $region3: #{tpu_custom_call.1} parent=1 // loop_header
      %s26 = sphi 0, %s30
      %p27 = scmp.ge.s32.totalorder %s26, 10
      %s33 = sphi 0, %s45
      %s34 = sphi 0, %s41
      %s35 = sphi 0, %s33
      %s36 = sphi 0, %s34
      %s37 = sphi 0, %s35
      %s38 = sphi 0, %s36
      %s48 = sphi 0, %s50
      %s51 = sphi 0, %s48
      %s52 = sphi 0, %s51
      %s68 = sphi 0, %s52
      %s74 = sphi 0, %s76
      %s77 = sphi 0, %s74
      %s78 = sphi 0, %s77
      %s94 = sphi 0, %s78
      %s100 = sphi 0, %s102
      %s103 = sphi 0, %s100
      %s104 = sphi 0, %s103
      %s120 = sphi 0, %s104
      %s126 = sphi 0, %s128
      %s129 = sphi 0, %s126
      %s130 = sphi 0, %s129
      %s146 = sphi 0, %s130
      %s152 = sphi 0, %s154
      %s155 = sphi 0, %s152
      %s156 = sphi 0, %s155
      %s172 = sphi 0, %s156
      %s178 = sphi 0, %s180
      %s181 = sphi 0, %s178
      %s182 = sphi 0, %s181
      %s198 = sphi 0, %s182
      %s204 = sphi 0, %s206
      %s207 = sphi 0, %s204
      %s208 = sphi 0, %s207
      %s224 = sphi 0, %s208
      %s230 = sphi 0, %s232
      %s233 = sphi 0, %s230
      %s234 = sphi 0, %s233
      %s250 = sphi 0, %s234
      %s256 = sphi 0, %s258
      %s259 = sphi 0, %s256
      %s260 = sphi 0, %s259
      %s276 = sphi 0, %s260
      %s282 = sphi 0, %s284
      %s285 = sphi 0, %s282
      %s286 = sphi 0, %s285
      %s302 = sphi 0, %s286
      %s306 = sphi 0, %s306
      %s308 = sphi 0, %s306
      %s309 = sphi 0, %s308
      %s323 = sphi 0, %s309
      %s327 = sphi 0, %s327
      %s329 = sphi 0, %s327
      %s330 = sphi 0, %s329
      %s344 = sphi 0, %s330
      %s350 = sphi 0, %s352
      %s353 = sphi 0, %s350
      %s354 = sphi 0, %s353
      %s370 = sphi 0, %s354
      %s378 = sphi 0, %s380
      %s381 = sphi 0, %s378
      %s382 = sphi 0, %s381
      %s398 = sphi 0, %s382
    $region4: #{tpu_custom_call.1} parent=1 // loop_header_branch
      %29 = sbr.rel (%p27) target = $region8
    $region5: #{tpu_custom_call.1} parent=1 // loop_body
      %s31 = ssub.s32 %s26, 1
      %s32 = ssub.s32 %s26, 2
      %s39 = sadd.s32 1, %s34
      %p40 = scmp.ge.s32.totalorder %s39, 4
      %s41 = scalar_select %p40, 0, %s39
      %s42 = sadd.s32 1, %s33
      %s43 = scalar_select %p40, %s42, %s33
      %p44 = scmp.ge.s32.totalorder %s43, 2
      %s45 = scalar_select %p44, 0, %s43
      %s46 = ssub.s32 %s33, %s45
      %p47 = scmp.eq.s32.totalorder %s46, 0
      %s49 = sadd.s32 %s48, 1
      %s50 = scalar_select %p47, %s48, %s49
      %p53 = pneg %p47
      %p54 = scmp.eq.s32.totalorder %s26, 7
      %p55 = por %p53, %p54
      %p56 = scmp.ne.s32.totalorder %s48, %s51
      %p57 = scmp.eq.s32.totalorder %s26, 0
      %p58 = por %p56, %p57
      %p59 = scmp.ne.s32.totalorder %s48, %s51
      %p60 = scmp.eq.s32.totalorder %s31, 7
      %p61 = por %p59, %p60
      %p62 = scmp.ne.s32.totalorder %s51, %s52
      %p63 = scmp.eq.s32.totalorder %s31, 0
      %p64 = por %p62, %p63
      %p65 = scmp.ne.s32.totalorder %s51, %s52
      %p66 = scmp.eq.s32.totalorder %s32, 7
      %p67 = por %p65, %p66
      %p69 = scmp.ne.s32.totalorder %s52, %s68
      %p70 = scmp.eq.s32.totalorder %s32, 0
      %p71 = por %p69, %p70
      %s72 = ssub.s32 %s33, %s45
      %p73 = scmp.eq.s32.totalorder %s72, 0
      %s75 = sadd.s32 %s74, 1
      %s76 = scalar_select %p73, %s74, %s75
      %p79 = pneg %p73
      %p80 = scmp.eq.s32.totalorder %s26, 7
      %p81 = por %p79, %p80
      %p82 = scmp.ne.s32.totalorder %s74, %s77
      %p83 = scmp.eq.s32.totalorder %s26, 0
      %p84 = por %p82, %p83
      %p85 = scmp.ne.s32.totalorder %s74, %s77
      %p86 = scmp.eq.s32.totalorder %s31, 7
      %p87 = por %p85, %p86
      %p88 = scmp.ne.s32.totalorder %s77, %s78
      %p89 = scmp.eq.s32.totalorder %s31, 0
      %p90 = por %p88, %p89
      %p91 = scmp.ne.s32.totalorder %s77, %s78
      %p92 = scmp.eq.s32.totalorder %s32, 7
      %p93 = por %p91, %p92
      %p95 = scmp.ne.s32.totalorder %s78, %s94
      %p96 = scmp.eq.s32.totalorder %s32, 0
      %p97 = por %p95, %p96
      %s98 = ssub.s32 %s33, %s45
      %p99 = scmp.eq.s32.totalorder %s98, 0
      %s101 = sadd.s32 %s100, 1
      %s102 = scalar_select %p99, %s100, %s101
      %p105 = pneg %p99
      %p106 = scmp.eq.s32.totalorder %s26, 7
      %p107 = por %p105, %p106
      %p108 = scmp.ne.s32.totalorder %s100, %s103
      %p109 = scmp.eq.s32.totalorder %s26, 0
      %p110 = por %p108, %p109
      %p111 = scmp.ne.s32.totalorder %s100, %s103
      %p112 = scmp.eq.s32.totalorder %s31, 7
      %p113 = por %p111, %p112
      %p114 = scmp.ne.s32.totalorder %s103, %s104
      %p115 = scmp.eq.s32.totalorder %s31, 0
      %p116 = por %p114, %p115
      %p117 = scmp.ne.s32.totalorder %s103, %s104
      %p118 = scmp.eq.s32.totalorder %s32, 7
      %p119 = por %p117, %p118
      %p121 = scmp.ne.s32.totalorder %s104, %s120
      %p122 = scmp.eq.s32.totalorder %s32, 0
      %p123 = por %p121, %p122
      %s124 = ssub.s32 %s34, %s41
      %p125 = scmp.eq.s32.totalorder %s124, 0
      %s127 = sadd.s32 %s126, 1
      %s128 = scalar_select %p125, %s126, %s127
      %p131 = pneg %p125
      %p132 = scmp.eq.s32.totalorder %s26, 7
      %p133 = por %p131, %p132
      %p134 = scmp.ne.s32.totalorder %s126, %s129
      %p135 = scmp.eq.s32.totalorder %s26, 0
      %p136 = por %p134, %p135
      %p137 = scmp.ne.s32.totalorder %s126, %s129
      %p138 = scmp.eq.s32.totalorder %s31, 7
      %p139 = por %p137, %p138
      %p140 = scmp.ne.s32.totalorder %s129, %s130
      %p141 = scmp.eq.s32.totalorder %s31, 0
      %p142 = por %p140, %p141
      %p143 = scmp.ne.s32.totalorder %s129, %s130
      %p144 = scmp.eq.s32.totalorder %s32, 7
      %p145 = por %p143, %p144
      %p147 = scmp.ne.s32.totalorder %s130, %s146
      %p148 = scmp.eq.s32.totalorder %s32, 0
      %p149 = por %p147, %p148
      %s150 = ssub.s32 %s34, %s41
      %p151 = scmp.eq.s32.totalorder %s150, 0
      %s153 = sadd.s32 %s152, 1
      %s154 = scalar_select %p151, %s152, %s153
      %p157 = pneg %p151
      %p158 = scmp.eq.s32.totalorder %s26, 7
      %p159 = por %p157, %p158
      %p160 = scmp.ne.s32.totalorder %s152, %s155
      %p161 = scmp.eq.s32.totalorder %s26, 0
      %p162 = por %p160, %p161
      %p163 = scmp.ne.s32.totalorder %s152, %s155
      %p164 = scmp.eq.s32.totalorder %s31, 7
      %p165 = por %p163, %p164
      %p166 = scmp.ne.s32.totalorder %s155, %s156
      %p167 = scmp.eq.s32.totalorder %s31, 0
      %p168 = por %p166, %p167
      %p169 = scmp.ne.s32.totalorder %s155, %s156
      %p170 = scmp.eq.s32.totalorder %s32, 7
      %p171 = por %p169, %p170
      %p173 = scmp.ne.s32.totalorder %s156, %s172
      %p174 = scmp.eq.s32.totalorder %s32, 0
      %p175 = por %p173, %p174
      %s176 = ssub.s32 %s34, %s41
      %p177 = scmp.eq.s32.totalorder %s176, 0
      %s179 = sadd.s32 %s178, 1
      %s180 = scalar_select %p177, %s178, %s179
      %p183 = pneg %p177
      %p184 = scmp.eq.s32.totalorder %s26, 7
      %p185 = por %p183, %p184
      %p186 = scmp.ne.s32.totalorder %s178, %s181
      %p187 = scmp.eq.s32.totalorder %s26, 0
      %p188 = por %p186, %p187
      %p189 = scmp.ne.s32.totalorder %s178, %s181
      %p190 = scmp.eq.s32.totalorder %s31, 7
      %p191 = por %p189, %p190
      %p192 = scmp.ne.s32.totalorder %s181, %s182
      %p193 = scmp.eq.s32.totalorder %s31, 0
      %p194 = por %p192, %p193
      %p195 = scmp.ne.s32.totalorder %s181, %s182
      %p196 = scmp.eq.s32.totalorder %s32, 7
      %p197 = por %p195, %p196
      %p199 = scmp.ne.s32.totalorder %s182, %s198
      %p200 = scmp.eq.s32.totalorder %s32, 0
      %p201 = por %p199, %p200
      %s202 = ssub.s32 %s34, %s41
      %p203 = scmp.eq.s32.totalorder %s202, 0
      %s205 = sadd.s32 %s204, 1
      %s206 = scalar_select %p203, %s204, %s205
      %p209 = pneg %p203
      %p210 = scmp.eq.s32.totalorder %s26, 7
      %p211 = por %p209, %p210
      %p212 = scmp.ne.s32.totalorder %s204, %s207
      %p213 = scmp.eq.s32.totalorder %s26, 0
      %p214 = por %p212, %p213
      %p215 = scmp.ne.s32.totalorder %s204, %s207
      %p216 = scmp.eq.s32.totalorder %s31, 7
      %p217 = por %p215, %p216
      %p218 = scmp.ne.s32.totalorder %s207, %s208
      %p219 = scmp.eq.s32.totalorder %s31, 0
      %p220 = por %p218, %p219
      %p221 = scmp.ne.s32.totalorder %s207, %s208
      %p222 = scmp.eq.s32.totalorder %s32, 7
      %p223 = por %p221, %p222
      %p225 = scmp.ne.s32.totalorder %s208, %s224
      %p226 = scmp.eq.s32.totalorder %s32, 0
      %p227 = por %p225, %p226
      %s228 = ssub.s32 %s34, %s41
      %p229 = scmp.eq.s32.totalorder %s228, 0
      %s231 = sadd.s32 %s230, 1
      %s232 = scalar_select %p229, %s230, %s231
      %p235 = pneg %p229
      %p236 = scmp.eq.s32.totalorder %s26, 7
      %p237 = por %p235, %p236
      %p238 = scmp.ne.s32.totalorder %s230, %s233
      %p239 = scmp.eq.s32.totalorder %s26, 0
      %p240 = por %p238, %p239
      %p241 = scmp.ne.s32.totalorder %s230, %s233
      %p242 = scmp.eq.s32.totalorder %s31, 7
      %p243 = por %p241, %p242
      %p244 = scmp.ne.s32.totalorder %s233, %s234
      %p245 = scmp.eq.s32.totalorder %s31, 0
      %p246 = por %p244, %p245
      %p247 = scmp.ne.s32.totalorder %s233, %s234
      %p248 = scmp.eq.s32.totalorder %s32, 7
      %p249 = por %p247, %p248
      %p251 = scmp.ne.s32.totalorder %s234, %s250
      %p252 = scmp.eq.s32.totalorder %s32, 0
      %p253 = por %p251, %p252
      %s254 = ssub.s32 %s34, %s41
      %p255 = scmp.eq.s32.totalorder %s254, 0
      %s257 = sadd.s32 %s256, 1
      %s258 = scalar_select %p255, %s256, %s257
      %p261 = pneg %p255
      %p262 = scmp.eq.s32.totalorder %s26, 7
      %p263 = por %p261, %p262
      %p264 = scmp.ne.s32.totalorder %s256, %s259
      %p265 = scmp.eq.s32.totalorder %s26, 0
      %p266 = por %p264, %p265
      %p267 = scmp.ne.s32.totalorder %s256, %s259
      %p268 = scmp.eq.s32.totalorder %s31, 7
      %p269 = por %p267, %p268
      %p270 = scmp.ne.s32.totalorder %s259, %s260
      %p271 = scmp.eq.s32.totalorder %s31, 0
      %p272 = por %p270, %p271
      %p273 = scmp.ne.s32.totalorder %s259, %s260
      %p274 = scmp.eq.s32.totalorder %s32, 7
      %p275 = por %p273, %p274
      %p277 = scmp.ne.s32.totalorder %s260, %s276
      %p278 = scmp.eq.s32.totalorder %s32, 0
      %p279 = por %p277, %p278
      %s280 = ssub.s32 %s34, %s41
      %p281 = scmp.eq.s32.totalorder %s280, 0
      %s283 = sadd.s32 %s282, 1
      %s284 = scalar_select %p281, %s282, %s283
      %p287 = pneg %p281
      %p288 = scmp.eq.s32.totalorder %s26, 7
      %p289 = por %p287, %p288
      %p290 = scmp.ne.s32.totalorder %s282, %s285
      %p291 = scmp.eq.s32.totalorder %s26, 0
      %p292 = por %p290, %p291
      %p293 = scmp.ne.s32.totalorder %s282, %s285
      %p294 = scmp.eq.s32.totalorder %s31, 7
      %p295 = por %p293, %p294
      %p296 = scmp.ne.s32.totalorder %s285, %s286
      %p297 = scmp.eq.s32.totalorder %s31, 0
      %p298 = por %p296, %p297
      %p299 = scmp.ne.s32.totalorder %s285, %s286
      %p300 = scmp.eq.s32.totalorder %s32, 7
      %p301 = por %p299, %p300
      %p303 = scmp.ne.s32.totalorder %s286, %s302
      %p304 = scmp.eq.s32.totalorder %s32, 0
      %p305 = por %p303, %p304
      %s307 = sadd.s32 %s306, 1
      %p310 = scmp.eq.s32.totalorder %s26, 7
      %p311 = scmp.ne.s32.totalorder %s306, %s308
      %p312 = scmp.eq.s32.totalorder %s26, 0
      %p313 = por %p311, %p312
      %p314 = scmp.ne.s32.totalorder %s306, %s308
      %p315 = scmp.eq.s32.totalorder %s31, 7
      %p316 = por %p314, %p315
      %p317 = scmp.ne.s32.totalorder %s308, %s309
      %p318 = scmp.eq.s32.totalorder %s31, 0
      %p319 = por %p317, %p318
      %p320 = scmp.ne.s32.totalorder %s308, %s309
      %p321 = scmp.eq.s32.totalorder %s32, 7
      %p322 = por %p320, %p321
      %p324 = scmp.ne.s32.totalorder %s309, %s323
      %p325 = scmp.eq.s32.totalorder %s32, 0
      %p326 = por %p324, %p325
      %s328 = sadd.s32 %s327, 1
      %p331 = scmp.eq.s32.totalorder %s26, 7
      %p332 = scmp.ne.s32.totalorder %s327, %s329
      %p333 = scmp.eq.s32.totalorder %s26, 0
      %p334 = por %p332, %p333
      %p335 = scmp.ne.s32.totalorder %s327, %s329
      %p336 = scmp.eq.s32.totalorder %s31, 7
      %p337 = por %p335, %p336
      %p338 = scmp.ne.s32.totalorder %s329, %s330
      %p339 = scmp.eq.s32.totalorder %s31, 0
      %p340 = por %p338, %p339
      %p341 = scmp.ne.s32.totalorder %s329, %s330
      %p342 = scmp.eq.s32.totalorder %s32, 7
      %p343 = por %p341, %p342
      %p345 = scmp.ne.s32.totalorder %s330, %s344
      %p346 = scmp.eq.s32.totalorder %s32, 0
      %p347 = por %p345, %p346
      %s348 = ssub.s32 %s33, %s45
      %p349 = scmp.eq.s32.totalorder %s348, 0
      %s351 = sadd.s32 %s350, 1
      %s352 = scalar_select %p349, %s350, %s351
      %p355 = pneg %p349
      %p356 = scmp.eq.s32.totalorder %s26, 7
      %p357 = por %p355, %p356
      %p358 = scmp.ne.s32.totalorder %s350, %s353
      %p359 = scmp.eq.s32.totalorder %s26, 0
      %p360 = por %p358, %p359
      %p361 = scmp.ne.s32.totalorder %s350, %s353
      %p362 = scmp.eq.s32.totalorder %s31, 7
      %p363 = por %p361, %p362
      %p364 = scmp.ne.s32.totalorder %s353, %s354
      %p365 = scmp.eq.s32.totalorder %s31, 0
      %p366 = por %p364, %p365
      %p367 = scmp.ne.s32.totalorder %s353, %s354
      %p368 = scmp.eq.s32.totalorder %s32, 7
      %p369 = por %p367, %p368
      %p371 = scmp.ne.s32.totalorder %s354, %s370
      %p372 = scmp.eq.s32.totalorder %s32, 0
      %p373 = por %p371, %p372
      %s374 = ssub.s32 %s33, %s45
      %s375 = ssub.s32 %s34, %s41
      %s376 = sor.u32 %s374, %s375
      %p377 = scmp.eq.s32.totalorder %s376, 0
      %s379 = sadd.s32 %s378, 1
      %s380 = scalar_select %p377, %s378, %s379
      %p383 = pneg %p377
      %p384 = scmp.eq.s32.totalorder %s26, 7
      %p385 = por %p383, %p384
      %p386 = scmp.ne.s32.totalorder %s378, %s381
      %p387 = scmp.eq.s32.totalorder %s26, 0
      %p388 = por %p386, %p387
      %p389 = scmp.ne.s32.totalorder %s378, %s381
      %p390 = scmp.eq.s32.totalorder %s31, 7
      %p391 = por %p389, %p390
      %p392 = scmp.ne.s32.totalorder %s381, %s382
      %p393 = scmp.eq.s32.totalorder %s31, 0
      %p394 = por %p392, %p393
      %p395 = scmp.ne.s32.totalorder %s381, %s382
      %p396 = scmp.eq.s32.totalorder %s32, 7
      %p397 = por %p395, %p396
      %p399 = scmp.ne.s32.totalorder %s382, %s398
      %p400 = scmp.eq.s32.totalorder %s32, 0
      %p401 = por %p399, %p400
      %p402 = scmp.le.s32.totalorder 1, %s26
      %p403 = scmp.lt.s32.totalorder %s26, 9
      %p404 = pnand %p402, %p403
      %p405 = pneg %p404
      // Predicated region
      $region9: #{tpu_custom_call.1} parent=5 // pred_check
        _
      $region10: #{tpu_custom_call.1} parent=5 // pred_check_branch
        %407 = sbr.rel (%p404) target = $region12
      $region11: #{tpu_custom_call.1} parent=5 // pred_region
        %s408 = ssub.s32 %s26, 1
        // Predicated region
        $region13: #{tpu_custom_call.1} parent=11 // pred_check
          %p409 = pneg %p319
        $region14: #{tpu_custom_call.1} parent=11 // pred_check_branch
          %411 = sbr.rel (%p409) target = $region16
        $region15: #{tpu_custom_call.1} parent=11 // pred_region
          _
        $region16: #{tpu_custom_call.1} parent=11 // pred_fallthru
          _
        // Predicated region
        $region17: #{tpu_custom_call.1} parent=11 // pred_check
          %p412 = pneg %p340
        $region18: #{tpu_custom_call.1} parent=11 // pred_check_branch
          %414 = sbr.rel (%p412) target = $region20
        $region19: #{tpu_custom_call.1} parent=11 // pred_region
          _
        $region20: #{tpu_custom_call.1} parent=11 // pred_fallthru
          _
      $region12: #{tpu_custom_call.1} parent=5 // pred_fallthru
        _
      %p415 = scmp.lt.s32.totalorder %s26, 8
      // Predicated region
      $region21: #{tpu_custom_call.1} parent=5 // pred_check
        %p416 = pneg %p415
      $region22: #{tpu_custom_call.1} parent=5 // pred_check_branch
        %418 = sbr.rel (%p416) target = $region24
      $region23: #{tpu_custom_call.1} parent=5 // pred_region
        // Predicated region
        $region25: #{tpu_custom_call.1} parent=23 // pred_check
          %p419 = pneg %p58
        $region26: #{tpu_custom_call.1} parent=23 // pred_check_branch
          %421 = sbr.rel (%p419) target = $region28
        $region27: #{tpu_custom_call.1} parent=23 // pred_region
          %p422 = scmp.lt.s32.totalorder %s33, 1
          %s423 = scalar_select %p422, %s33, 1
          %s424 = smul.addr %s423, 4
          %s425 = scalar_lea.vmem %s0, %s424
        $region28: #{tpu_custom_call.1} parent=23 // pred_fallthru
          _
        // Predicated region
        $region29: #{tpu_custom_call.1} parent=23 // pred_check
          %p426 = pneg %p84
        $region30: #{tpu_custom_call.1} parent=23 // pred_check_branch
          %428 = sbr.rel (%p426) target = $region32
        $region31: #{tpu_custom_call.1} parent=23 // pred_region
          %p429 = scmp.lt.s32.totalorder %s33, 1
          %s430 = scalar_select %p429, %s33, 1
          %s431 = smul.addr %s430, 4
          %s432 = scalar_lea.vmem %s1, %s431
        $region32: #{tpu_custom_call.1} parent=23 // pred_fallthru
          _
        // Predicated region
        $region33: #{tpu_custom_call.1} parent=23 // pred_check
          %p433 = pneg %p110
        $region34: #{tpu_custom_call.1} parent=23 // pred_check_branch
          %435 = sbr.rel (%p433) target = $region36
        $region35: #{tpu_custom_call.1} parent=23 // pred_region
          %p436 = scmp.lt.s32.totalorder %s33, 1
          %s437 = scalar_select %p436, %s33, 1
          %s438 = smul.addr %s437, 4
          %s439 = scalar_lea.vmem %s2, %s438
        $region36: #{tpu_custom_call.1} parent=23 // pred_fallthru
          _
        // Predicated region
        $region37: #{tpu_custom_call.1} parent=23 // pred_check
          %p440 = pneg %p136
        $region38: #{tpu_custom_call.1} parent=23 // pred_check_branch
          %442 = sbr.rel (%p440) target = $region40
        $region39: #{tpu_custom_call.1} parent=23 // pred_region
          %p443 = scmp.lt.s32.totalorder %s34, 3
          %s444 = scalar_select %p443, %s34, 3
          %s445 = smul.addr %s444, 4
          %s446 = smul.addr %s445, 4
          %s447 = scalar_lea.vmem %s3, %s446
        $region40: #{tpu_custom_call.1} parent=23 // pred_fallthru
          _
        // Predicated region
        $region41: #{tpu_custom_call.1} parent=23 // pred_check
          %p448 = pneg %p162
        $region42: #{tpu_custom_call.1} parent=23 // pred_check_branch
          %450 = sbr.rel (%p448) target = $region44
        $region43: #{tpu_custom_call.1} parent=23 // pred_region
          %p451 = scmp.lt.s32.totalorder %s34, 3
          %s452 = scalar_select %p451, %s34, 3
          %s453 = smul.addr %s452, 4
          %s454 = smul.addr %s453, 4
          %s455 = scalar_lea.vmem %s4, %s454
        $region44: #{tpu_custom_call.1} parent=23 // pred_fallthru
          _
        // Predicated region
        $region45: #{tpu_custom_call.1} parent=23 // pred_check
          %p456 = pneg %p188
        $region46: #{tpu_custom_call.1} parent=23 // pred_check_branch
          %458 = sbr.rel (%p456) target = $region48
        $region47: #{tpu_custom_call.1} parent=23 // pred_region
          %p459 = scmp.lt.s32.totalorder %s34, 3
          %s460 = scalar_select %p459, %s34, 3
          %s461 = smul.addr %s460, 4
          %s462 = smul.addr %s461, 4
          %s463 = scalar_lea.vmem %s5, %s462
        $region48: #{tpu_custom_call.1} parent=23 // pred_fallthru
          _
        // Predicated region
        $region49: #{tpu_custom_call.1} parent=23 // pred_check
          %p464 = pneg %p214
        $region50: #{tpu_custom_call.1} parent=23 // pred_check_branch
          %466 = sbr.rel (%p464) target = $region52
        $region51: #{tpu_custom_call.1} parent=23 // pred_region
          %p467 = scmp.lt.s32.totalorder %s34, 3
          %s468 = scalar_select %p467, %s34, 3
          %s469 = smul.addr %s468, 4
          %s470 = scalar_lea.vmem %s6, %s469
        $region52: #{tpu_custom_call.1} parent=23 // pred_fallthru
          _
        // Predicated region
        $region53: #{tpu_custom_call.1} parent=23 // pred_check
          %p471 = pneg %p240
        $region54: #{tpu_custom_call.1} parent=23 // pred_check_branch
          %473 = sbr.rel (%p471) target = $region56
        $region55: #{tpu_custom_call.1} parent=23 // pred_region
          %p474 = scmp.lt.s32.totalorder %s34, 3
          %s475 = scalar_select %p474, %s34, 3
          %s476 = scalar_lea.vmem %s7, %s475
        $region56: #{tpu_custom_call.1} parent=23 // pred_fallthru
          _
        // Predicated region
        $region57: #{tpu_custom_call.1} parent=23 // pred_check
          %p477 = pneg %p266
        $region58: #{tpu_custom_call.1} parent=23 // pred_check_branch
          %479 = sbr.rel (%p477) target = $region60
        $region59: #{tpu_custom_call.1} parent=23 // pred_region
          %p480 = scmp.lt.s32.totalorder %s34, 3
          %s481 = scalar_select %p480, %s34, 3
          %s482 = scalar_lea.vmem %s8, %s481
        $region60: #{tpu_custom_call.1} parent=23 // pred_fallthru
          _
        // Predicated region
        $region61: #{tpu_custom_call.1} parent=23 // pred_check
          %p483 = pneg %p292
        $region62: #{tpu_custom_call.1} parent=23 // pred_check_branch
          %485 = sbr.rel (%p483) target = $region64
        $region63: #{tpu_custom_call.1} parent=23 // pred_region
          %p486 = scmp.lt.s32.totalorder %s34, 3
          %s487 = scalar_select %p486, %s34, 3
          %s488 = scalar_lea.vmem %s9, %s487
        $region64: #{tpu_custom_call.1} parent=23 // pred_fallthru
          _
      $region24: #{tpu_custom_call.1} parent=5 // pred_fallthru
        _
      %p489 = scmp.le.s32.totalorder 1, %s26
      %p490 = scmp.lt.s32.totalorder %s26, 9
      %p491 = pnand %p489, %p490
      %p492 = pneg %p491
      // Predicated region
      $region65: #{tpu_custom_call.1} parent=5 // pred_check
        _
      $region66: #{tpu_custom_call.1} parent=5 // pred_check_branch
        %494 = sbr.rel (%p491) target = $region68
      $region67: #{tpu_custom_call.1} parent=5 // pred_region
        %s495 = ssub.s32 %s26, 1
        %p496 = scmp.lt.s32.totalorder %s35, 1
        %s497 = scalar_select %p496, %s35, 1
        %s498 = smul.addr %s497, 4
        %s499 = scalar_lea.vmem %s0, %s498
        %p500 = pneg %p64
        %p501 = pneg %p61
        %p502 = scmp.lt.s32.totalorder %s35, 1
        %s503 = scalar_select %p502, %s35, 1
        %s504 = smul.addr %s503, 4
        %s505 = scalar_lea.vmem %s1, %s504
        %p506 = pneg %p90
        %p507 = pneg %p87
        %p508 = scmp.lt.s32.totalorder %s35, 1
        %s509 = scalar_select %p508, %s35, 1
        %s510 = smul.addr %s509, 4
        %s511 = scalar_lea.vmem %s2, %s510
        %p512 = pneg %p116
        %p513 = pneg %p113
        %p514 = scmp.lt.s32.totalorder %s36, 3
        %s515 = scalar_select %p514, %s36, 3
        %s516 = smul.addr %s515, 4
        %s517 = smul.addr %s516, 4
        %s518 = scalar_lea.vmem %s3, %s517
        %p519 = pneg %p142
        %p520 = pneg %p139
        %p521 = scmp.lt.s32.totalorder %s36, 3
        %s522 = scalar_select %p521, %s36, 3
        %s523 = smul.addr %s522, 4
        %s524 = smul.addr %s523, 4
        %s525 = scalar_lea.vmem %s4, %s524
        %p526 = pneg %p168
        %p527 = pneg %p165
        %p528 = scmp.lt.s32.totalorder %s36, 3
        %s529 = scalar_select %p528, %s36, 3
        %s530 = smul.addr %s529, 4
        %s531 = smul.addr %s530, 4
        %s532 = scalar_lea.vmem %s5, %s531
        %p533 = pneg %p194
        %p534 = pneg %p191
        %p535 = scmp.lt.s32.totalorder %s36, 3
        %s536 = scalar_select %p535, %s36, 3
        %s537 = smul.addr %s536, 4
        %s538 = scalar_lea.vmem %s6, %s537
        %p539 = pneg %p220
        %p540 = pneg %p217
        %p541 = scmp.lt.s32.totalorder %s36, 3
        %s542 = scalar_select %p541, %s36, 3
        %s543 = scalar_lea.vmem %s7, %s542
        %p544 = pneg %p246
        %p545 = pneg %p243
        %p546 = scmp.lt.s32.totalorder %s36, 3
        %s547 = scalar_select %p546, %s36, 3
        %s548 = scalar_lea.vmem %s8, %s547
        %p549 = pneg %p272
        %p550 = pneg %p269
        %p551 = scmp.lt.s32.totalorder %s36, 3
        %s552 = scalar_select %p551, %s36, 3
        %s553 = scalar_lea.vmem %s9, %s552
        %p554 = pneg %p298
        %p555 = pneg %p295
        %p556 = pneg %p319
        %p557 = pneg %p316
        %p558 = pneg %p340
        %p559 = pneg %p337
        %p560 = pneg %p366
        %p561 = pneg %p363
        %s562 = sand.u32 %s353, 1
        %s563 = scalar_lea.sflag [#allocation3], %s562
        %s564 = sand.u32 %s353, 1
        %s565 = smul.addr %s564, 8
        %s566 = scalar_lea.vmem [#allocation2], %s565
        %p567 = pneg %p394
        %p568 = pneg %p391
        %s569 = sand.u32 %s381, 1
        %s570 = scalar_lea.sflag [#allocation5], %s569
        %s571 = sand.u32 %s381, 1
        %s572 = smul.addr %s571, 4
        %s573 = scalar_lea.vmem [#allocation4], %s572
        %p574 = scmp.lt.s32.totalorder %s35, 1
        %s575 = scalar_select %p574, %s35, 1
        %s576 = smul.addr %s575, 4
        %s577 = scalar_lea.vmem %s0, %s576
        %p578 = scmp.lt.s32.totalorder %s35, 1
        %s579 = scalar_select %p578, %s35, 1
        %s580 = smul.addr %s579, 4
        %s581 = scalar_lea.vmem %s1, %s580
        %p582 = scmp.lt.s32.totalorder %s35, 1
        %s583 = scalar_select %p582, %s35, 1
        %s584 = smul.addr %s583, 4
        %s585 = scalar_lea.vmem %s2, %s584
        %p586 = scmp.lt.s32.totalorder %s36, 3
        %s587 = scalar_select %p586, %s36, 3
        %s588 = smul.addr %s587, 4
        %s589 = smul.addr %s588, 4
        %s590 = scalar_lea.vmem %s3, %s589
        %p591 = scmp.lt.s32.totalorder %s36, 3
        %s592 = scalar_select %p591, %s36, 3
        %s593 = smul.addr %s592, 4
        %s594 = smul.addr %s593, 4
        %s595 = scalar_lea.vmem %s4, %s594
        %p596 = scmp.lt.s32.totalorder %s36, 3
        %s597 = scalar_select %p596, %s36, 3
        %s598 = smul.addr %s597, 4
        %s599 = smul.addr %s598, 4
        %s600 = scalar_lea.vmem %s5, %s599
        %p601 = scmp.lt.s32.totalorder %s36, 3
        %s602 = scalar_select %p601, %s36, 3
        %s603 = smul.addr %s602, 4
        %s604 = scalar_lea.vmem %s6, %s603
        %p605 = scmp.lt.s32.totalorder %s36, 3
        %s606 = scalar_select %p605, %s36, 3
        %s607 = scalar_lea.vmem %s7, %s606
        %p608 = scmp.lt.s32.totalorder %s36, 3
        %s609 = scalar_select %p608, %s36, 3
        %s610 = scalar_lea.vmem %s8, %s609
        %p611 = scmp.lt.s32.totalorder %s36, 3
        %s612 = scalar_select %p611, %s36, 3
        %s613 = scalar_lea.vmem %s9, %s612
        %v615 = vld [vmem:[%s577] sm:$0xf]
        %v616 = vld [vmem:[%s590] sm:$0xf]
        %v617 = vld [vmem:[%s590 + $0x4] sm:$0xf]
        %v618 = vld [vmem:[%s590 + $0x8] sm:$0xf]
        %v619 = vld [vmem:[%s590 + $0xc] sm:$0xf]
        %v620 = vld [vmem:[%s607] sm:$0x1]
        %v622 = vperm.slane %v620, 0
        %v628 = vunpack.c.l.b16 %v616
        %v629 = vunpack.c.l.b16 %v617
        %v630 = vunpack.c.l.b16 %v618
        %v631 = vunpack.c.l.b16 %v619
        %v632 = vpack.c.b16 %v629, %v628
        %v633 = vpack.c.b16 %v631, %v630
        %vm636 = vcmask 261120
        %v638 = vsel %vm636, %v615, 0
        %640 = vmatpush.bf16.msra.mxu0 0
        %641 = vmatpush.bf16.msra.mxu0 0
        %642 = vmatpush.bf16.msra.mxu0 0
        %643 = vmatpush.bf16.msra.mxu0 0
        %644 = vmatpush.bf16.msra.mxu0 0
        %645 = vmatpush.bf16.msra.mxu0 0
        %646 = vmatpush.bf16.msra.mxu0 %v633
        %647 = vmatpush.bf16.msra.mxu0 %v632
        %648 = vmatmul.bf16.gmra.mxu0 %v638
        %v649 = vpop.f32.mrf.mxu0
        %v650 = vadd.f32 %v622, %v649
        %v651 = vpop.f32.mrf.mxu0
        %652 = vdwg.mxu0
        %v653 = vld [vmem:[%s581] sm:$0xf]
        %v654 = vld [vmem:[%s595] sm:$0xf]
        %v655 = vld [vmem:[%s595 + $0x4] sm:$0xf]
        %v656 = vld [vmem:[%s595 + $0x8] sm:$0xf]
        %v657 = vld [vmem:[%s595 + $0xc] sm:$0xf]
        %v658 = vld [vmem:[%s610] sm:$0x1]
        %v660 = vperm.slane %v658, 0
        %v666 = vunpack.c.l.b16 %v654
        %v667 = vunpack.c.l.b16 %v655
        %v668 = vunpack.c.l.b16 %v656
        %v669 = vunpack.c.l.b16 %v657
        %v670 = vpack.c.b16 %v667, %v666
        %v671 = vpack.c.b16 %v669, %v668
        %v675 = vsel %vm636, %v653, 0
        %677 = vmatpush.bf16.msra.mxu0 0
        %678 = vmatpush.bf16.msra.mxu0 0
        %679 = vmatpush.bf16.msra.mxu0 0
        %680 = vmatpush.bf16.msra.mxu0 0
        %681 = vmatpush.bf16.msra.mxu0 0
        %682 = vmatpush.bf16.msra.mxu0 0
        %683 = vmatpush.bf16.msra.mxu0 %v671
        %684 = vmatpush.bf16.msra.mxu0 %v670
        %685 = vmatmul.bf16.gmra.mxu0 %v675
        %v686 = vpop.f32.mrf.mxu0
        %v687 = vadd.f32 %v660, %v686
        %v688 = vpop.f32.mrf.mxu0
        %689 = vdwg.mxu0
        %v690 = vld [vmem:[%s585] sm:$0xf]
        %v691 = vld [vmem:[%s600] sm:$0xf]
        %v692 = vld [vmem:[%s600 + $0x4] sm:$0xf]
        %v693 = vld [vmem:[%s600 + $0x8] sm:$0xf]
        %v694 = vld [vmem:[%s600 + $0xc] sm:$0xf]
        %v695 = vld [vmem:[%s613] sm:$0x1]
        %v697 = vperm.slane %v695, 0
        %v703 = vunpack.c.l.b16 %v691
        %v704 = vunpack.c.l.b16 %v692
        %v705 = vunpack.c.l.b16 %v693
        %v706 = vunpack.c.l.b16 %v694
        %v707 = vpack.c.b16 %v704, %v703
        %v708 = vpack.c.b16 %v706, %v705
        %v712 = vsel %vm636, %v690, 0
        %714 = vmatpush.bf16.msra.mxu0 0
        %715 = vmatpush.bf16.msra.mxu0 0
        %716 = vmatpush.bf16.msra.mxu0 0
        %717 = vmatpush.bf16.msra.mxu0 0
        %718 = vmatpush.bf16.msra.mxu0 0
        %719 = vmatpush.bf16.msra.mxu0 0
        %720 = vmatpush.bf16.msra.mxu0 %v708
        %721 = vmatpush.bf16.msra.mxu0 %v707
        %722 = vmatmul.bf16.gmra.mxu0 %v712
        %v723 = vpop.f32.mrf.mxu0
        %v724 = vadd.f32 %v697, %v723
        %v725 = vpop.f32.mrf.mxu0
        %726 = vdwg.mxu0
        %v727 = vld [vmem:[%s11] sm:$0xff]
        %v728 = vadd.f32 %v687, %v727
        %v729 = vpack.c.bf16 %v728, %v728
        %v730 = vpack.c.bf16 %v650, %v650
        %vm731 = vcmask 64512
        %v733 = vsel %vm731, %v730, 0
        %v736 = vsel %vm731, %v729, 0
        %738 = vmatpush.bf16.xpose.msra.mxu0 0
        %739 = vmatpush.bf16.xpose.msra.mxu0 0
        %740 = vmatpush.bf16.xpose.msra.mxu0 0
        %741 = vmatpush.bf16.xpose.msra.mxu0 0
        %742 = vmatpush.bf16.xpose.msra.mxu0 0
        %743 = vmatpush.bf16.xpose.msra.mxu0 0
        %744 = vmatpush.bf16.xpose.msra.mxu0 0
        %745 = vmatpush.bf16.xpose.msra.mxu0 %v736
        %746 = vmatmul.bf16.gmra.mxu0 %v733
        %v747 = vpop.f32.mrf.mxu0
        %v748 = vadd.f32 0.0, %v747
        %v749 = vpop.f32.mrf.mxu0
        %750 = vdwg.mxu0
        %v751 = vsel %vm731, %v748, -inf
        %752 = vmax.xlane.f32.xlu0 %v751
        %v753 = vpop.xlane.xlu0 %752
        %v754 = vsub.f32 %v748, %v753
        %v755 = vmul.f32 %v754, 1.442695
        %v756 = vpow.pop %v755
        %v757 = vsel %vm731, %v756, 0.0
        %758 = vadd.xlane.f32.xlu0 %v757
        %v759 = vpop.xlane.xlu0 %758
        %v760 = vrcp.pop %v759
        %v761 = vmul.f32 %v756, %v760
        %v762 = vpack.c.bf16 %v761, %v761
        %vm763 = vcmask 60416
        %764 = vst.msk [vmem:[%s573] sm:$0xf] %vm763, %v762
        %v765 = vpack.c.bf16 %v724, %v724
        %v767 = vsel %vm731, %v762, 0
        %vm769 = vcmask 1043456
        %v771 = vsel %vm769, %v765, 0
        %773 = vmatpush.bf16.msra.mxu0 0
        %774 = vmatpush.bf16.msra.mxu0 0
        %775 = vmatpush.bf16.msra.mxu0 0
        %776 = vmatpush.bf16.msra.mxu0 0
        %777 = vmatpush.bf16.msra.mxu0 0
        %778 = vmatpush.bf16.msra.mxu0 0
        %779 = vmatpush.bf16.msra.mxu0 0
        %780 = vmatpush.bf16.msra.mxu0 %v771
        %781 = vmatmul.bf16.gmra.mxu0 %v767
        %v782 = vpop.f32.mrf.mxu0
        %v783 = vadd.f32 0.0, %v782
        %v784 = vpop.f32.mrf.mxu0
        %785 = vdwg.mxu0
        %v786 = vpack.c.bf16 %v783, %v783
        %v787 = vld [vmem:[%s604] sm:$0xf]
        %v789 = vsel %vm731, %v786, 0
        %v792 = vsel %vm769, %v787, 0
        %794 = vmatpush.bf16.msra.mxu0 0
        %795 = vmatpush.bf16.msra.mxu0 0
        %796 = vmatpush.bf16.msra.mxu0 0
        %797 = vmatpush.bf16.msra.mxu0 0
        %798 = vmatpush.bf16.msra.mxu0 0
        %799 = vmatpush.bf16.msra.mxu0 0
        %800 = vmatpush.bf16.msra.mxu0 0
        %801 = vmatpush.bf16.msra.mxu0 %v792
        %802 = vmatmul.bf16.gmra.mxu0 %v789
        %v803 = vpop.f32.mrf.mxu0
        %v804 = vadd.f32 0.0, %v803
        %v805 = vpop.f32.mrf.mxu0
        %806 = vdwg.mxu0
        %p807 = scmp.eq.s32.totalorder %s36, 0
        // Predicated region
        $region69: #{tpu_custom_call.1} parent=67 // pred_check
          %p808 = pneg %p807
        $region70: #{tpu_custom_call.1} parent=67 // pred_check_branch
          %810 = sbr.rel (%p808) target = $region72
        $region71: #{tpu_custom_call.1} parent=67 // pred_region
          %811 = vst.msk [vmem:[%s566] sm:$0xff] %vm636, 0.0
        $region72: #{tpu_custom_call.1} parent=67 // pred_fallthru
          _
        %v812 = vld [vmem:[%s566] sm:$0xff]
        %v813 = vadd.f32 %v812, %v804
        %814 = vst.msk [vmem:[%s566] sm:$0xff] %vm636, %v813
        %p815 = scmp.eq.s32.totalorder %s36, 3
        // Predicated region
        $region73: #{tpu_custom_call.1} parent=67 // pred_check
          %p816 = pneg %p815
        $region74: #{tpu_custom_call.1} parent=67 // pred_check_branch
          %818 = sbr.rel (%p816) target = $region76
        $region75: #{tpu_custom_call.1} parent=67 // pred_region
          %v819 = vld [vmem:[%s566] sm:$0xff]
          %v820 = vld [vmem:[%s10] sm:$0x1]
          %v822 = vperm.slane %v820, 0
          %v824 = vadd.f32 %v819, %v822
          %825 = vst.msk [vmem:[%s566] sm:$0xff] %vm636, %v824
        $region76: #{tpu_custom_call.1} parent=67 // pred_fallthru
          _
        %s826 = sand.u32 %s353, 1
        %s827 = scalar_lea.sflag [#allocation3], %s826
        %s828 = sand.u32 %s353, 1
        %s829 = smul.addr %s828, 8
        %s830 = scalar_lea.vmem [#allocation2], %s829
        %s831 = sand.u32 %s381, 1
        %s832 = scalar_lea.sflag [#allocation5], %s831
        %s833 = sand.u32 %s381, 1
        %s834 = smul.addr %s833, 4
        %s835 = scalar_lea.vmem [#allocation4], %s834
        // Predicated region
        $region77: #{tpu_custom_call.1} parent=67 // pred_check
          %p836 = pneg %p363
        $region78: #{tpu_custom_call.1} parent=67 // pred_check_branch
          %838 = sbr.rel (%p836) target = $region80
        $region79: #{tpu_custom_call.1} parent=67 // pred_region
          %840 = vsyncadd %s827, 0
          %s841 = smul.addr %s35, 8
          %s842 = scalar_lea.hbm %s12, %s841
          %s844 = sshll.u32 %s830, 4
          %s845 = int_to_ptr.vmem [resolvable:$true] %s844
          %s846 = sshll.u32 %s842, 4
          %s847 = int_to_ptr.hbm [resolvable:$true] %s846
          %849 = dma.vmem_to_hbm [thread:$0]  %s845, 128, %s847, %s827
        $region80: #{tpu_custom_call.1} parent=67 // pred_fallthru
          _
        // Predicated region
        $region81: #{tpu_custom_call.1} parent=67 // pred_check
          %p850 = pneg %p391
        $region82: #{tpu_custom_call.1} parent=67 // pred_check_branch
          %852 = sbr.rel (%p850) target = $region84
        $region83: #{tpu_custom_call.1} parent=67 // pred_region
          %854 = vsyncadd %s832, 0
          %s855 = smul.addr %s35, 4
          %s856 = sadd.s32 %s36, %s855
          %s857 = smul.addr %s856, 4
          %s858 = scalar_lea.hbm %s13, %s857
          %s860 = sshll.u32 %s835, 4
          %s861 = int_to_ptr.vmem [resolvable:$true] %s860
          %s862 = sshll.u32 %s858, 4
          %s863 = int_to_ptr.hbm [resolvable:$true] %s862
          %865 = dma.vmem_to_hbm [thread:$0]  %s861, 64, %s863, %s832
        $region84: #{tpu_custom_call.1} parent=67 // pred_fallthru
          _
      $region68: #{tpu_custom_call.1} parent=5 // pred_fallthru
        _
      %p866 = scmp.le.s32.totalorder 2, %s26
      // Predicated region
      $region85: #{tpu_custom_call.1} parent=5 // pred_check
        %p867 = pneg %p866
      $region86: #{tpu_custom_call.1} parent=5 // pred_check_branch
        %869 = sbr.rel (%p867) target = $region88
      $region87: #{tpu_custom_call.1} parent=5 // pred_region
        %s870 = ssub.s32 %s26, 2
        // Predicated region
        $region89: #{tpu_custom_call.1} parent=87 // pred_check
          %p871 = pneg %p369
        $region90: #{tpu_custom_call.1} parent=87 // pred_check_branch
          %873 = sbr.rel (%p871) target = $region92
        $region91: #{tpu_custom_call.1} parent=87 // pred_region
          %s874 = sand.u32 %s354, 1
          %s875 = scalar_lea.sflag [#allocation3], %s874
          %s876 = sand.u32 %s354, 1
          %s877 = smul.addr %s876, 8
          %s878 = scalar_lea.vmem [#allocation2], %s877
          %880 = dma.done %s875, 128
        $region92: #{tpu_custom_call.1} parent=87 // pred_fallthru
          _
        // Predicated region
        $region93: #{tpu_custom_call.1} parent=87 // pred_check
          %p881 = pneg %p397
        $region94: #{tpu_custom_call.1} parent=87 // pred_check_branch
          %883 = sbr.rel (%p881) target = $region96
        $region95: #{tpu_custom_call.1} parent=87 // pred_region
          %s884 = sand.u32 %s382, 1
          %s885 = scalar_lea.sflag [#allocation5], %s884
          %s886 = sand.u32 %s382, 1
          %s887 = smul.addr %s886, 4
          %s888 = scalar_lea.vmem [#allocation4], %s887
          %890 = dma.done %s885, 64
        $region96: #{tpu_custom_call.1} parent=87 // pred_fallthru
          _
      $region88: #{tpu_custom_call.1} parent=5 // pred_fallthru
        _
    $region6: #{tpu_custom_call.1} parent=1 // loop_footer
      %s30 = sadd.s32 1, %s26
    $region7: #{tpu_custom_call.1} parent=1 // loop_footer_branch
      %25 = sbr.rel target = $region3
    $region8: #{tpu_custom_call.1} parent=1 // loop_exit
      _
    %891 = vsyncpa [#allocation3], 1
    %s892 = scalar_lea.sflag [#allocation3], 1
    %893 = vsyncpa %s892, 1
    %894 = vsyncpa [#allocation5], 1
    %s895 = scalar_lea.sflag [#allocation5], 1
    %896 = vsyncpa %s895, 1

</llo_original>
